<compile_context>
chip_gen: v6e
topology: v6e:2x2x1
jax: 0.10.0
libtpu: 0.0.40
codegen_flags: <defaults>
</compile_context>

<pallas_src>
import numpy as np
import jax
import jax.numpy as jnp
from jax.experimental import pallas as pl
from jax.experimental.pallas import tpu as pltpu

FL = 90.27941412273405


# ----------------------------------------------------------------------------
# __init__-time precompute (plain numpy, mirrors A2P.__init__)
# ----------------------------------------------------------------------------
def _rot_x(phi):
    # cv2.Rodrigues(phi * [1,0,0]) == rotation about the x axis (closed form).
    c, s = np.cos(phi), np.sin(phi)
    return np.array([[1.0, 0.0, 0.0],
                     [0.0,   c,  -s],
                     [0.0,   s,   c]], dtype=np.float64)


def _build_loc(out_dim, focal_l, radius):
    c_x = (out_dim - 1) / 2.0
    c_y = (out_dim - 1) / 2.0
    f = focal_l
    w_len = radius / f * out_dim
    interval = w_len / (out_dim - 1)
    z_map = np.zeros([out_dim, out_dim], np.float64) + radius
    x_map = np.tile((np.arange(out_dim) - c_x) * interval, [out_dim, 1])
    y_map = np.tile((np.arange(out_dim) - c_y) * interval, [out_dim, 1]).T
    D = np.sqrt(x_map ** 2 + y_map ** 2 + z_map ** 2)
    xyz = np.stack([radius / D * x_map,
                    radius / D * y_map,
                    radius / D * z_map], axis=-1)                 # (out, out, 3)
    reshape_xyz = xyz.reshape(out_dim * out_dim, 3).T             # (3, P)

    locs = []
    for phi in (np.pi / 2.0, -np.pi / 2.0):                       # R_lst[4:] -> +90 / -90 deg
        R = _rot_x(phi)
        result = (R @ reshape_xyz).T                              # (P, 3)
        lon = np.arctan2(result[:, 0], result[:, 2]).reshape(out_dim, out_dim) / np.pi
        lat = np.arcsin(result[:, 1] / radius).reshape(out_dim, out_dim) / (np.pi / 2.0)
        locs.append(np.stack([lon, lat], axis=-1).astype(np.float32))   # (out, out, 2)
    return locs   # [up_coor, down_coor]; self.xyz / GetGrid() is init-only state.


def _bilinear_coeffs(loc, H, W):
    """grid_sample(bilinear, padding_mode='zeros', align_corners=False) coeffs."""
    gx = loc[..., 0].reshape(-1).astype(np.float64)    # x -> width
    gy = loc[..., 1].reshape(-1).astype(np.float64)    # y -> height
    ix = ((gx + 1.0) * W - 1.0) / 2.0
    iy = ((gy + 1.0) * H - 1.0) / 2.0
    x0 = np.floor(ix); y0 = np.floor(iy)
    x1 = x0 + 1.0;     y1 = y0 + 1.0
    wx1 = ix - x0; wx0 = 1.0 - wx1
    wy1 = iy - y0; wy0 = 1.0 - wy1
    idxs, ws = [], []
    for xc, yc, wxc, wyc in ((x0, y0, wx0, wy0), (x1, y0, wx1, wy0),
                             (x0, y1, wx0, wy1), (x1, y1, wx1, wy1)):
        inb = (xc >= 0) & (xc <= W - 1) & (yc >= 0) & (yc <= H - 1)
        w = np.where(inb, wxc * wyc, 0.0)              # zeros padding
        xcc = np.clip(xc, 0, W - 1)
        ycc = np.clip(yc, 0, H - 1)
        idxs.append((ycc * W + xcc).astype(np.int64))
        ws.append(w.astype(np.float32))
    return np.stack(idxs, 0), np.stack(ws, 0)          # (4, P), (4, P)


def _selection_matrix(loc, H, W):
    """Dense (H*W, P) matrix s.t. out = img_flat @ M reproduces grid_sample."""
    idx, w = _bilinear_coeffs(loc, H, W)
    P = idx.shape[1]
    M = np.zeros((H * W, P), np.float32)
    cols = np.broadcast_to(np.arange(P, dtype=np.int64), (4, P))
    np.add.at(M, (idx.reshape(-1), cols.reshape(-1)), w.reshape(-1))
    return M


def _round_up(x, m):
    return ((x + m - 1) // m) * m


def _pick_tile(dim, base, max_tile):
    """Largest multiple of `base` that divides `dim` and is <= max_tile."""
    t = min(dim, max_tile)
    t -= t % base
    if t <= 0:
        t = base
    while dim % t:
        t -= base
    return t


# ----------------------------------------------------------------------------
# Pallas kernel: tiled, pipelined matmul  out = img @ M
# (output block is invariant along the reduction axis -> accumulate in-place)
# ----------------------------------------------------------------------------
def _a2p_matmul_kernel(img_ref, m_ref, out_ref):
    @pl.when(pl.program_id(2) == 0)
    def _():
        out_ref[...] = jnp.zeros_like(out_ref)

    out_ref[...] += jnp.dot(img_ref[...], m_ref[...],
                            preferred_element_type=jnp.float32)


def _a2p_grid_sample(img_flat, M, *, tm_max=256, tn_max=512, tk_max=1024):
    NC, HW = img_flat.shape
    HW2, P2 = M.shape
    assert HW == HW2
    # tile sizes: sublane axis multiple of 8, lane axes multiples of 128;
    # conservative maxima keep double-buffered VMEM well under the v7x budget.
    tm = _pick_tile(NC, 8, tm_max)
    tn = _pick_tile(P2, 128, tn_max)
    tk = _pick_tile(HW, 128, tk_max)

    cost = pl.CostEstimate(
        flops=2 * NC * HW * P2,
        transcendentals=0,
        bytes_accessed=4 * (NC * HW + HW * P2 + NC * P2),
    )
    return pl.pallas_call(
        _a2p_matmul_kernel,
        out_shape=jax.ShapeDtypeStruct((NC, P2), jnp.float32),
        grid_spec=pltpu.PrefetchScalarGridSpec(
            num_scalar_prefetch=0,
            grid=(NC // tm, P2 // tn, HW // tk),
            in_specs=[pl.BlockSpec((tm, tk), lambda i, j, k: (i, k)),
                      pl.BlockSpec((tk, tn), lambda i, j, k: (k, j))],
            out_specs=pl.BlockSpec((tm, tn), lambda i, j, k: (i, j))),
        compiler_params=pltpu.CompilerParams(
            dimension_semantics=("parallel", "parallel", "arbitrary"),
            vmem_limit_bytes=32 * 1024 * 1024),
        cost_estimate=cost,
    )(img_flat, M)


# ----------------------------------------------------------------------------
# Module wrapper
# ----------------------------------------------------------------------------
class A2PPallas:
    def __init__(self, equ_size=(16, 32), out_dim=16, focal_l=FL, radius=90,
                 up_flip=True):
        self.equ_h, self.equ_w = equ_size
        self.out_dim = out_dim
        self.up_flip = up_flip

        up_loc, down_loc = _build_loc(out_dim, focal_l, radius)
        # Fold the up-view vertical flip into M's column order (free at init).
        up_loc_for_m = up_loc[::-1, :, :] if up_flip else up_loc
        M_up = _selection_matrix(up_loc_for_m, self.equ_h, self.equ_w)    # (HW, P)
        M_dn = _selection_matrix(down_loc, self.equ_h, self.equ_w)        # (HW, P)
        M = np.concatenate([M_up, M_dn], axis=1)                          # (HW, 2P)

        self.HW = self.equ_h * self.equ_w
        self.P2 = 2 * out_dim * out_dim
        self.HWp = _round_up(self.HW, 128)
        self.P2p = _round_up(self.P2, 128)
        if (self.HWp, self.P2p) != M.shape:
            M = np.pad(M, ((0, self.HWp - self.HW), (0, self.P2p - self.P2)))
        self.M = jnp.asarray(M)                                           # (HWp, P2p) f32

    def __call__(self, batch):
        # batch: (N, C, H_equ, W_equ) float32 (NCHW, matches the torch module)
        N, C, H, W = batch.shape
        assert H == self.equ_h and W == self.equ_w
        NC = N * C
        NCp = _round_up(NC, 8)

        img = batch.reshape(NC, H * W).astype(jnp.float32)
        if self.HWp != self.HW:
            img = jnp.pad(img, ((0, 0), (0, self.HWp - self.HW)))
        if NCp != NC:
            img = jnp.pad(img, ((0, NCp - NC), (0, 0)))

        out = _a2p_grid_sample(img, self.M)                 # (NCp, P2p)
        out = out[:NC, :self.P2]

        P = self.out_dim * self.out_dim
        up = out[:, :P].reshape(N, C, self.out_dim, self.out_dim)
        down = out[:, P:].reshape(N, C, self.out_dim, self.out_dim)
        # up flip already folded into M's column order.
        return up, down


# ----------------------------------------------------------------------------
# Independent reference (numpy gather, mirrors torch semantics incl. the flip)
# ----------------------------------------------------------------------------
def _ref_forward(batch, out_dim, equ_size, focal_l, radius, up_flip):
    H, W = equ_size
    up_loc, down_loc = _build_loc(out_dim, focal_l, radius)
    N, C = batch.shape[0], batch.shape[1]
    flat = np.asarray(batch, dtype=np.float32).reshape(N * C, H * W)
    outs = []
    for loc in (up_loc, down_loc):
        idx, w = _bilinear_coeffs(loc, H, W)
        gathered = flat[:, idx]                          # (NC, 4, P)
        outs.append(np.sum(gathered * w[None, :, :], axis=1))
    up = outs[0].reshape(N, C, out_dim, out_dim)
    down = outs[1].reshape(N, C, out_dim, out_dim)
    if up_flip:
        up = up[:, :, ::-1, :]
    return up, down


if __name__ == "__main__":
    # small shapes consistent with the module: equirect (H, 2H), square out view
    N, C, EQU_H, EQU_W, OUT = 2, 4, 16, 32, 16
    key = jax.random.PRNGKey(0)
    batch = jax.random.normal(key, (N, C, EQU_H, EQU_W), dtype=jnp.float32)

    a2p = A2PPallas(equ_size=(EQU_H, EQU_W), out_dim=OUT, focal_l=FL,
                    radius=90, up_flip=True)

    up, down = a2p(batch)
    up = jax.block_until_ready(up)
    down = jax.block_until_ready(down)

    up_ref, down_ref = _ref_forward(batch, OUT, (EQU_H, EQU_W), FL, 90, True)
    assert up.shape == (N, C, OUT, OUT) and down.shape == (N, C, OUT, OUT)
    np.testing.assert_allclose(np.asarray(up), up_ref, atol=1e-4, rtol=1e-4)
    np.testing.assert_allclose(np.asarray(down), down_ref, atol=1e-4, rtol=1e-4)

    print("KERNEL_OK")
</pallas_src>

<mosaic_0001>
module attributes {stable_mosaic.version = 11 : i64} {
  func.func @_a2p_matmul_kernel(%arg0: i32, %arg1: i32, %arg2: i32, %arg3: memref<8x512xf32, #tpu.memory_space<vmem>>, %arg4: memref<512x512xf32, #tpu.memory_space<vmem>>, %arg5: memref<8x512xf32, #tpu.memory_space<vmem>>) attributes {dimension_semantics = [#tpu.dimension_semantics<parallel>, #tpu.dimension_semantics<parallel>, #tpu.dimension_semantics<arbitrary>], iteration_bounds = array<i64: 1, 1, 1>, scalar_prefetch = 0 : i64, scratch_operands = 0 : i64, tpu.core_type = #tpu.core_type<tc>, window_params = [{transform_indices = @transform_0, window_bounds = array<i64: 8, 512>}, {transform_indices = @transform_1, window_bounds = array<i64: 512, 512>}, {transform_indices = @transform_2, window_bounds = array<i64: 8, 512>}]} {
    %c0_i32 = arith.constant 0 : i32
    %0 = arith.cmpi eq, %arg2, %c0_i32 : i32
    %1 = arith.extui %0 : i1 to i32
    %c0_i32_0 = arith.constant 0 : i32
    %2 = arith.cmpi ne, %1, %c0_i32_0 : i32
    scf.if %2 {
      %cst_8 = arith.constant 0.000000e+00 : f32
      %9 = vector.broadcast %cst_8 : f32 to vector<8x512xf32>
      %c0_9 = arith.constant 0 : index
      %c0_10 = arith.constant 0 : index
      %10 = vector.load %arg5[%c0_9, %c0_10] : memref<8x512xf32, #tpu.memory_space<vmem>>, vector<8x512xf32>
      tpu.vector_store %arg5[%c0_9, %c0_10], %9 {strides = array<i32>} : memref<8x512xf32, #tpu.memory_space<vmem>>, vector<8x512xf32>,
    } else {
    }
    %c0 = arith.constant 0 : index
    %c0_1 = arith.constant 0 : index
    %3 = vector.load %arg5[%c0, %c0_1] : memref<8x512xf32, #tpu.memory_space<vmem>>, vector<8x512xf32>
    %c0_2 = arith.constant 0 : index
    %c0_3 = arith.constant 0 : index
    %4 = vector.load %arg3[%c0_2, %c0_3] : memref<8x512xf32, #tpu.memory_space<vmem>>, vector<8x512xf32>
    %c0_4 = arith.constant 0 : index
    %c0_5 = arith.constant 0 : index
    %5 = vector.load %arg4[%c0_4, %c0_5] : memref<512x512xf32, #tpu.memory_space<vmem>>, vector<512x512xf32>
    %cst = arith.constant dense<0.000000e+00> : vector<8x512xf32>
    %6 = tpu.matmul %4, %5, %cst {dimension_numbers = #tpu.dot_dimension_numbers<[1], [0], [0], [1], [0, 0, 1, 1], [], []>} : vector<8x512xf32>, vector<512x512xf32>, vector<8x512xf32> -> vector<8x512xf32>
    %7 = arith.addf %3, %6 : vector<8x512xf32>
    %c0_6 = arith.constant 0 : index
    %c0_7 = arith.constant 0 : index
    %8 = vector.load %arg5[%c0_6, %c0_7] : memref<8x512xf32, #tpu.memory_space<vmem>>, vector<8x512xf32>
    tpu.vector_store %arg5[%c0_6, %c0_7], %7 {strides = array<i32>} : memref<8x512xf32, #tpu.memory_space<vmem>>, vector<8x512xf32>,
    return
  }
  func.func @transform_0(%arg0: i32, %arg1: i32, %arg2: i32) -> (i32, i32) {
    %c0_i32 = arith.constant 0 : i32
    return %arg0, %arg2 : i32, i32
  }
  func.func @transform_1(%arg0: i32, %arg1: i32, %arg2: i32) -> (i32, i32) {
    %c0_i32 = arith.constant 0 : i32
    return %arg2, %arg1 : i32, i32
  }
  func.func @transform_2(%arg0: i32, %arg1: i32, %arg2: i32) -> (i32, i32) {
    %c0_i32 = arith.constant 0 : i32
    return %arg0, %arg1 : i32, i32
  }
}

</mosaic_0001>

<llo_original>
// kernel: tpu_custom_call.1
$region0: #{tpu_custom_call.1}
  #allocation0 [shape = 'u32[]', space=smem, size = 0x4, offset = 0x4, fixed_abs, tag = 'smem constant byte address 0x4 - core index']
  #allocation1 [shape = 'u32[144,128]{1,0:T(1,128)}', space=vmem, size = 0x12000, scoped, tag = 'internal scratch']
  %s0 = inlined_call_operand.hbm [shape: f32[8,512], index: 0, kind: input, shape index: {}]
  %s1 = inlined_call_operand.hbm [shape: f32[512,512], index: 1, kind: input, shape index: {}]
  %s2 = inlined_call_operand.hbm [shape: f32[8,512], index: 2, kind: output, shape index: {}]
  %s3 = sld [smem:[#allocation0]]
  $region30: #{tpu_custom_call.1} parent=0
    _
  %s5 = ssub.s32 1, %s3
  %s6 = scalar_select 0, %s5, %s3
  $region1: #{tpu_custom_call.1} parent=0
    #allocation2 [shape = 'u8[16384]{0}', space=vmem, size = 0x4000, scoped, tag = 'input window, operand 0, single buffered']
    #allocation3 [shape = 's32[1]{0}', space=sflag, size = 0x4, scoped, tag = 'scoped memory for tpu_custom_call.1']
    #allocation4 [shape = 's32[1]{0}', space=sflag, size = 0x4, scoped, tag = 'scoped memory for tpu_custom_call.1']
    #allocation5 [shape = 'u8[1048576]{0}', space=vmem, size = 0x100000, scoped, tag = 'input window, operand 1, single buffered']
    #allocation6 [shape = 's32[1]{0}', space=sflag, size = 0x4, scoped, tag = 'scoped memory for tpu_custom_call.1']
    #allocation7 [shape = 'u8[16384]{0}', space=vmem, size = 0x4000, scoped, tag = 'output window, operand 0, single buffered']
    %7 = vsyncpa [#allocation3], 0
    %8 = vsyncpa [#allocation6], 0
    %9 = vsyncpa [#allocation4], 0
    // Predicated region
    $region2: #{tpu_custom_call.1} parent=1 // pred_check
      _
    $region3: #{tpu_custom_call.1} parent=1 // pred_check_branch
      %11 = sbr.rel (0) target = $region5
    $region4: #{tpu_custom_call.1} parent=1 // pred_region
      %s13 = ssub.s32 512, 512
      %14 = vsyncadd [#allocation3], %s13
      %s16 = sshll.u32 [#allocation2], 4
      %s17 = int_to_ptr.vmem [resolvable:$true] %s16
      %19 = dma.hbm_to_vmem [thread:$0]  %s0, 512, %s17, [#allocation3]
    $region5: #{tpu_custom_call.1} parent=1 // pred_fallthru
      _
    // Predicated region
    $region6: #{tpu_custom_call.1} parent=1 // pred_check
      _
    $region7: #{tpu_custom_call.1} parent=1 // pred_check_branch
      %21 = sbr.rel (0) target = $region9
    $region8: #{tpu_custom_call.1} parent=1 // pred_region
      %s23 = ssub.s32 32768, 32768
      %24 = vsyncadd [#allocation6], %s23
      %s25 = sshll.u32 [#allocation5], 4
      %s26 = int_to_ptr.vmem [resolvable:$true] %s25
      %31 = dma.hbm_to_vmem [thread:$0]  %s1, 32768, %s26, [#allocation6], 512, 512, 32
    $region9: #{tpu_custom_call.1} parent=1 // pred_fallthru
      _
    // Predicated region
    $region10: #{tpu_custom_call.1} parent=1 // pred_check
      _
    $region11: #{tpu_custom_call.1} parent=1 // pred_check_branch
      %33 = sbr.rel (0) target = $region13
    $region12: #{tpu_custom_call.1} parent=1 // pred_region
      %34 = dma.done [#allocation3], 512
    $region13: #{tpu_custom_call.1} parent=1 // pred_fallthru
      _
    // Predicated region
    $region14: #{tpu_custom_call.1} parent=1 // pred_check
      _
    $region15: #{tpu_custom_call.1} parent=1 // pred_check_branch
      %36 = sbr.rel (0) target = $region17
    $region16: #{tpu_custom_call.1} parent=1 // pred_region
      %37 = dma.done [#allocation6], 32768
    $region17: #{tpu_custom_call.1} parent=1 // pred_fallthru
      _
    %p38 = scmp.eq.s32.totalorder 0, 0
    // Predicated region
    $region18: #{tpu_custom_call.1} parent=1 // pred_check
      %p39 = pneg %p38
    $region19: #{tpu_custom_call.1} parent=1 // pred_check_branch
      %41 = sbr.rel (%p39) target = $region21
    $region20: #{tpu_custom_call.1} parent=1 // pred_region
      %42 = vst [vmem:[#allocation7] sm:$0xff] 0.0
      %43 = vst [vmem:[#allocation7 + $0x8] sm:$0xff] 0.0
      %44 = vst [vmem:[#allocation7 + $0x10] sm:$0xff] 0.0
      %45 = vst [vmem:[#allocation7 + $0x18] sm:$0xff] 0.0
    $region21: #{tpu_custom_call.1} parent=1 // pred_fallthru
      _
    %v46 = vld [vmem:[#allocation7] sm:$0xff]
    %v47 = vld [vmem:[#allocation7 + $0x8] sm:$0xff]
    %v48 = vld [vmem:[#allocation7 + $0x10] sm:$0xff]
    %v49 = vld [vmem:[#allocation7 + $0x18] sm:$0xff]
    %v50 = vld [vmem:[#allocation2] sm:$0xff]
    %v51 = vld [vmem:[#allocation2 + $0x8] sm:$0xff]
    %v52 = vld [vmem:[#allocation2 + $0x10] sm:$0xff]
    %v53 = vld [vmem:[#allocation2 + $0x18] sm:$0xff]
    %v54 = vld [vmem:[#allocation5] sm:$0xff]
    %v55 = vld [vmem:[#allocation5 + $0x8] sm:$0xff]
    %v56 = vld [vmem:[#allocation5 + $0x10] sm:$0xff]
    %v57 = vld [vmem:[#allocation5 + $0x18] sm:$0xff]
    %v58 = vld [vmem:[#allocation5 + $0x20] sm:$0xff]
    %v59 = vld [vmem:[#allocation5 + $0x28] sm:$0xff]
    %v60 = vld [vmem:[#allocation5 + $0x30] sm:$0xff]
    %v61 = vld [vmem:[#allocation5 + $0x38] sm:$0xff]
    %v62 = vld [vmem:[#allocation5 + $0x40] sm:$0xff]
    %v63 = vld [vmem:[#allocation5 + $0x48] sm:$0xff]
    %v64 = vld [vmem:[#allocation5 + $0x50] sm:$0xff]
    %v65 = vld [vmem:[#allocation5 + $0x58] sm:$0xff]
    %v66 = vld [vmem:[#allocation5 + $0x60] sm:$0xff]
    %v67 = vld [vmem:[#allocation5 + $0x68] sm:$0xff]
    %v68 = vld [vmem:[#allocation5 + $0x70] sm:$0xff]
    %v69 = vld [vmem:[#allocation5 + $0x78] sm:$0xff]
    %v70 = vld [vmem:[#allocation5 + $0x80] sm:$0xff]
    %v71 = vld [vmem:[#allocation5 + $0x88] sm:$0xff]
    %v72 = vld [vmem:[#allocation5 + $0x90] sm:$0xff]
    %v73 = vld [vmem:[#allocation5 + $0x98] sm:$0xff]
    %v74 = vld [vmem:[#allocation5 + $0xa0] sm:$0xff]
    %v75 = vld [vmem:[#allocation5 + $0xa8] sm:$0xff]
    %v76 = vld [vmem:[#allocation5 + $0xb0] sm:$0xff]
    %v77 = vld [vmem:[#allocation5 + $0xb8] sm:$0xff]
    %v78 = vld [vmem:[#allocation5 + $0xc0] sm:$0xff]
    %v79 = vld [vmem:[#allocation5 + $0xc8] sm:$0xff]
    %v80 = vld [vmem:[#allocation5 + $0xd0] sm:$0xff]
    %v81 = vld [vmem:[#allocation5 + $0xd8] sm:$0xff]
    %v82 = vld [vmem:[#allocation5 + $0xe0] sm:$0xff]
    %v83 = vld [vmem:[#allocation5 + $0xe8] sm:$0xff]
    %v84 = vld [vmem:[#allocation5 + $0xf0] sm:$0xff]
    %v85 = vld [vmem:[#allocation5 + $0xf8] sm:$0xff]
    %v86 = vld [vmem:[#allocation5 + $0x100] sm:$0xff]
    %v87 = vld [vmem:[#allocation5 + $0x108] sm:$0xff]
    %v88 = vld [vmem:[#allocation5 + $0x110] sm:$0xff]
    %v89 = vld [vmem:[#allocation5 + $0x118] sm:$0xff]
    %v90 = vld [vmem:[#allocation5 + $0x120] sm:$0xff]
    %v91 = vld [vmem:[#allocation5 + $0x128] sm:$0xff]
    %v92 = vld [vmem:[#allocation5 + $0x130] sm:$0xff]
    %v93 = vld [vmem:[#allocation5 + $0x138] sm:$0xff]
    %v94 = vld [vmem:[#allocation5 + $0x140] sm:$0xff]
    %v95 = vld [vmem:[#allocation5 + $0x148] sm:$0xff]
    %v96 = vld [vmem:[#allocation5 + $0x150] sm:$0xff]
    %v97 = vld [vmem:[#allocation5 + $0x158] sm:$0xff]
    %v98 = vld [vmem:[#allocation5 + $0x160] sm:$0xff]
    %v99 = vld [vmem:[#allocation5 + $0x168] sm:$0xff]
    %v100 = vld [vmem:[#allocation5 + $0x170] sm:$0xff]
    %v101 = vld [vmem:[#allocation5 + $0x178] sm:$0xff]
    %v102 = vld [vmem:[#allocation5 + $0x180] sm:$0xff]
    %v103 = vld [vmem:[#allocation5 + $0x188] sm:$0xff]
    %v104 = vld [vmem:[#allocation5 + $0x190] sm:$0xff]
    %v105 = vld [vmem:[#allocation5 + $0x198] sm:$0xff]
    %v106 = vld [vmem:[#allocation5 + $0x1a0] sm:$0xff]
    %v107 = vld [vmem:[#allocation5 + $0x1a8] sm:$0xff]
    %v108 = vld [vmem:[#allocation5 + $0x1b0] sm:$0xff]
    %v109 = vld [vmem:[#allocation5 + $0x1b8] sm:$0xff]
    %v110 = vld [vmem:[#allocation5 + $0x1c0] sm:$0xff]
    %v111 = vld [vmem:[#allocation5 + $0x1c8] sm:$0xff]
    %v112 = vld [vmem:[#allocation5 + $0x1d0] sm:$0xff]
    %v113 = vld [vmem:[#allocation5 + $0x1d8] sm:$0xff]
    %v114 = vld [vmem:[#allocation5 + $0x1e0] sm:$0xff]
    %v115 = vld [vmem:[#allocation5 + $0x1e8] sm:$0xff]
    %v116 = vld [vmem:[#allocation5 + $0x1f0] sm:$0xff]
    %v117 = vld [vmem:[#allocation5 + $0x1f8] sm:$0xff]
    %v118 = vld [vmem:[#allocation5 + $0x200] sm:$0xff]
    %v119 = vld [vmem:[#allocation5 + $0x208] sm:$0xff]
    %v120 = vld [vmem:[#allocation5 + $0x210] sm:$0xff]
    %v121 = vld [vmem:[#allocation5 + $0x218] sm:$0xff]
    %v122 = vld [vmem:[#allocation5 + $0x220] sm:$0xff]
    %v123 = vld [vmem:[#allocation5 + $0x228] sm:$0xff]
    %v124 = vld [vmem:[#allocation5 + $0x230] sm:$0xff]
    %v125 = vld [vmem:[#allocation5 + $0x238] sm:$0xff]
    %v126 = vld [vmem:[#allocation5 + $0x240] sm:$0xff]
    %v127 = vld [vmem:[#allocation5 + $0x248] sm:$0xff]
    %v128 = vld [vmem:[#allocation5 + $0x250] sm:$0xff]
    %v129 = vld [vmem:[#allocation5 + $0x258] sm:$0xff]
    %v130 = vld [vmem:[#allocation5 + $0x260] sm:$0xff]
    %v131 = vld [vmem:[#allocation5 + $0x268] sm:$0xff]
    %v132 = vld [vmem:[#allocation5 + $0x270] sm:$0xff]
    %v133 = vld [vmem:[#allocation5 + $0x278] sm:$0xff]
    %v134 = vld [vmem:[#allocation5 + $0x280] sm:$0xff]
    %v135 = vld [vmem:[#allocation5 + $0x288] sm:$0xff]
    %v136 = vld [vmem:[#allocation5 + $0x290] sm:$0xff]
    %v137 = vld [vmem:[#allocation5 + $0x298] sm:$0xff]
    %v138 = vld [vmem:[#allocation5 + $0x2a0] sm:$0xff]
    %v139 = vld [vmem:[#allocation5 + $0x2a8] sm:$0xff]
    %v140 = vld [vmem:[#allocation5 + $0x2b0] sm:$0xff]
    %v141 = vld [vmem:[#allocation5 + $0x2b8] sm:$0xff]
    %v142 = vld [vmem:[#allocation5 + $0x2c0] sm:$0xff]
    %v143 = vld [vmem:[#allocation5 + $0x2c8] sm:$0xff]
    %v144 = vld [vmem:[#allocation5 + $0x2d0] sm:$0xff]
    %v145 = vld [vmem:[#allocation5 + $0x2d8] sm:$0xff]
    %v146 = vld [vmem:[#allocation5 + $0x2e0] sm:$0xff]
    %v147 = vld [vmem:[#allocation5 + $0x2e8] sm:$0xff]
    %v148 = vld [vmem:[#allocation5 + $0x2f0] sm:$0xff]
    %v149 = vld [vmem:[#allocation5 + $0x2f8] sm:$0xff]
    %v150 = vld [vmem:[#allocation5 + $0x300] sm:$0xff]
    %v151 = vld [vmem:[#allocation5 + $0x308] sm:$0xff]
    %v152 = vld [vmem:[#allocation5 + $0x310] sm:$0xff]
    %v153 = vld [vmem:[#allocation5 + $0x318] sm:$0xff]
    %v154 = vld [vmem:[#allocation5 + $0x320] sm:$0xff]
    %v155 = vld [vmem:[#allocation5 + $0x328] sm:$0xff]
    %v156 = vld [vmem:[#allocation5 + $0x330] sm:$0xff]
    %v157 = vld [vmem:[#allocation5 + $0x338] sm:$0xff]
    %v158 = vld [vmem:[#allocation5 + $0x340] sm:$0xff]
    %v159 = vld [vmem:[#allocation5 + $0x348] sm:$0xff]
    %v160 = vld [vmem:[#allocation5 + $0x350] sm:$0xff]
    %v161 = vld [vmem:[#allocation5 + $0x358] sm:$0xff]
    %v162 = vld [vmem:[#allocation5 + $0x360] sm:$0xff]
    %v163 = vld [vmem:[#allocation5 + $0x368] sm:$0xff]
    %v164 = vld [vmem:[#allocation5 + $0x370] sm:$0xff]
    %v165 = vld [vmem:[#allocation5 + $0x378] sm:$0xff]
    %v166 = vld [vmem:[#allocation5 + $0x380] sm:$0xff]
    %v167 = vld [vmem:[#allocation5 + $0x388] sm:$0xff]
    %v168 = vld [vmem:[#allocation5 + $0x390] sm:$0xff]
    %v169 = vld [vmem:[#allocation5 + $0x398] sm:$0xff]
    %v170 = vld [vmem:[#allocation5 + $0x3a0] sm:$0xff]
    %v171 = vld [vmem:[#allocation5 + $0x3a8] sm:$0xff]
    %v172 = vld [vmem:[#allocation5 + $0x3b0] sm:$0xff]
    %v173 = vld [vmem:[#allocation5 + $0x3b8] sm:$0xff]
    %v174 = vld [vmem:[#allocation5 + $0x3c0] sm:$0xff]
    %v175 = vld [vmem:[#allocation5 + $0x3c8] sm:$0xff]
    %v176 = vld [vmem:[#allocation5 + $0x3d0] sm:$0xff]
    %v177 = vld [vmem:[#allocation5 + $0x3d8] sm:$0xff]
    %v178 = vld [vmem:[#allocation5 + $0x3e0] sm:$0xff]
    %v179 = vld [vmem:[#allocation5 + $0x3e8] sm:$0xff]
    %v180 = vld [vmem:[#allocation5 + $0x3f0] sm:$0xff]
    %v181 = vld [vmem:[#allocation5 + $0x3f8] sm:$0xff]
    %v182 = vld [vmem:[#allocation5 + $0x400] sm:$0xff]
    %v183 = vld [vmem:[#allocation5 + $0x408] sm:$0xff]
    %v184 = vld [vmem:[#allocation5 + $0x410] sm:$0xff]
    %v185 = vld [vmem:[#allocation5 + $0x418] sm:$0xff]
    %v186 = vld [vmem:[#allocation5 + $0x420] sm:$0xff]
    %v187 = vld [vmem:[#allocation5 + $0x428] sm:$0xff]
    %v188 = vld [vmem:[#allocation5 + $0x430] sm:$0xff]
    %v189 = vld [vmem:[#allocation5 + $0x438] sm:$0xff]
    %v190 = vld [vmem:[#allocation5 + $0x440] sm:$0xff]
    %v191 = vld [vmem:[#allocation5 + $0x448] sm:$0xff]
    %v192 = vld [vmem:[#allocation5 + $0x450] sm:$0xff]
    %v193 = vld [vmem:[#allocation5 + $0x458] sm:$0xff]
    %v194 = vld [vmem:[#allocation5 + $0x460] sm:$0xff]
    %v195 = vld [vmem:[#allocation5 + $0x468] sm:$0xff]
    %v196 = vld [vmem:[#allocation5 + $0x470] sm:$0xff]
    %v197 = vld [vmem:[#allocation5 + $0x478] sm:$0xff]
    %v198 = vld [vmem:[#allocation5 + $0x480] sm:$0xff]
    %v199 = vld [vmem:[#allocation5 + $0x488] sm:$0xff]
    %v200 = vld [vmem:[#allocation5 + $0x490] sm:$0xff]
    %v201 = vld [vmem:[#allocation5 + $0x498] sm:$0xff]
    %v202 = vld [vmem:[#allocation5 + $0x4a0] sm:$0xff]
    %v203 = vld [vmem:[#allocation5 + $0x4a8] sm:$0xff]
    %v204 = vld [vmem:[#allocation5 + $0x4b0] sm:$0xff]
    %v205 = vld [vmem:[#allocation5 + $0x4b8] sm:$0xff]
    %v206 = vld [vmem:[#allocation5 + $0x4c0] sm:$0xff]
    %v207 = vld [vmem:[#allocation5 + $0x4c8] sm:$0xff]
    %v208 = vld [vmem:[#allocation5 + $0x4d0] sm:$0xff]
    %v209 = vld [vmem:[#allocation5 + $0x4d8] sm:$0xff]
    %v210 = vld [vmem:[#allocation5 + $0x4e0] sm:$0xff]
    %v211 = vld [vmem:[#allocation5 + $0x4e8] sm:$0xff]
    %v212 = vld [vmem:[#allocation5 + $0x4f0] sm:$0xff]
    %v213 = vld [vmem:[#allocation5 + $0x4f8] sm:$0xff]
    %v214 = vld [vmem:[#allocation5 + $0x500] sm:$0xff]
    %v215 = vld [vmem:[#allocation5 + $0x508] sm:$0xff]
    %v216 = vld [vmem:[#allocation5 + $0x510] sm:$0xff]
    %v217 = vld [vmem:[#allocation5 + $0x518] sm:$0xff]
    %v218 = vld [vmem:[#allocation5 + $0x520] sm:$0xff]
    %v219 = vld [vmem:[#allocation5 + $0x528] sm:$0xff]
    %v220 = vld [vmem:[#allocation5 + $0x530] sm:$0xff]
    %v221 = vld [vmem:[#allocation5 + $0x538] sm:$0xff]
    %v222 = vld [vmem:[#allocation5 + $0x540] sm:$0xff]
    %v223 = vld [vmem:[#allocation5 + $0x548] sm:$0xff]
    %v224 = vld [vmem:[#allocation5 + $0x550] sm:$0xff]
    %v225 = vld [vmem:[#allocation5 + $0x558] sm:$0xff]
    %v226 = vld [vmem:[#allocation5 + $0x560] sm:$0xff]
    %v227 = vld [vmem:[#allocation5 + $0x568] sm:$0xff]
    %v228 = vld [vmem:[#allocation5 + $0x570] sm:$0xff]
    %v229 = vld [vmem:[#allocation5 + $0x578] sm:$0xff]
    %v230 = vld [vmem:[#allocation5 + $0x580] sm:$0xff]
    %v231 = vld [vmem:[#allocation5 + $0x588] sm:$0xff]
    %v232 = vld [vmem:[#allocation5 + $0x590] sm:$0xff]
    %v233 = vld [vmem:[#allocation5 + $0x598] sm:$0xff]
    %v234 = vld [vmem:[#allocation5 + $0x5a0] sm:$0xff]
    %v235 = vld [vmem:[#allocation5 + $0x5a8] sm:$0xff]
    %v236 = vld [vmem:[#allocation5 + $0x5b0] sm:$0xff]
    %v237 = vld [vmem:[#allocation5 + $0x5b8] sm:$0xff]
    %v238 = vld [vmem:[#allocation5 + $0x5c0] sm:$0xff]
    %v239 = vld [vmem:[#allocation5 + $0x5c8] sm:$0xff]
    %v240 = vld [vmem:[#allocation5 + $0x5d0] sm:$0xff]
    %v241 = vld [vmem:[#allocation5 + $0x5d8] sm:$0xff]
    %v242 = vld [vmem:[#allocation5 + $0x5e0] sm:$0xff]
    %v243 = vld [vmem:[#allocation5 + $0x5e8] sm:$0xff]
    %v244 = vld [vmem:[#allocation5 + $0x5f0] sm:$0xff]
    %v245 = vld [vmem:[#allocation5 + $0x5f8] sm:$0xff]
    %v246 = vld [vmem:[#allocation5 + $0x600] sm:$0xff]
    %v247 = vld [vmem:[#allocation5 + $0x608] sm:$0xff]
    %v248 = vld [vmem:[#allocation5 + $0x610] sm:$0xff]
    %v249 = vld [vmem:[#allocation5 + $0x618] sm:$0xff]
    %v250 = vld [vmem:[#allocation5 + $0x620] sm:$0xff]
    %v251 = vld [vmem:[#allocation5 + $0x628] sm:$0xff]
    %v252 = vld [vmem:[#allocation5 + $0x630] sm:$0xff]
    %v253 = vld [vmem:[#allocation5 + $0x638] sm:$0xff]
    %v254 = vld [vmem:[#allocation5 + $0x640] sm:$0xff]
    %v255 = vld [vmem:[#allocation5 + $0x648] sm:$0xff]
    %v256 = vld [vmem:[#allocation5 + $0x650] sm:$0xff]
    %v257 = vld [vmem:[#allocation5 + $0x658] sm:$0xff]
    %v258 = vld [vmem:[#allocation5 + $0x660] sm:$0xff]
    %v259 = vld [vmem:[#allocation5 + $0x668] sm:$0xff]
    %v260 = vld [vmem:[#allocation5 + $0x670] sm:$0xff]
    %v261 = vld [vmem:[#allocation5 + $0x678] sm:$0xff]
    %v262 = vld [vmem:[#allocation5 + $0x680] sm:$0xff]
    %v263 = vld [vmem:[#allocation5 + $0x688] sm:$0xff]
    %v264 = vld [vmem:[#allocation5 + $0x690] sm:$0xff]
    %v265 = vld [vmem:[#allocation5 + $0x698] sm:$0xff]
    %v266 = vld [vmem:[#allocation5 + $0x6a0] sm:$0xff]
    %v267 = vld [vmem:[#allocation5 + $0x6a8] sm:$0xff]
    %v268 = vld [vmem:[#allocation5 + $0x6b0] sm:$0xff]
    %v269 = vld [vmem:[#allocation5 + $0x6b8] sm:$0xff]
    %v270 = vld [vmem:[#allocation5 + $0x6c0] sm:$0xff]
    %v271 = vld [vmem:[#allocation5 + $0x6c8] sm:$0xff]
    %v272 = vld [vmem:[#allocation5 + $0x6d0] sm:$0xff]
    %v273 = vld [vmem:[#allocation5 + $0x6d8] sm:$0xff]
    %v274 = vld [vmem:[#allocation5 + $0x6e0] sm:$0xff]
    %v275 = vld [vmem:[#allocation5 + $0x6e8] sm:$0xff]
    %v276 = vld [vmem:[#allocation5 + $0x6f0] sm:$0xff]
    %v277 = vld [vmem:[#allocation5 + $0x6f8] sm:$0xff]
    %v278 = vld [vmem:[#allocation5 + $0x700] sm:$0xff]
    %v279 = vld [vmem:[#allocation5 + $0x708] sm:$0xff]
    %v280 = vld [vmem:[#allocation5 + $0x710] sm:$0xff]
    %v281 = vld [vmem:[#allocation5 + $0x718] sm:$0xff]
    %v282 = vld [vmem:[#allocation5 + $0x720] sm:$0xff]
    %v283 = vld [vmem:[#allocation5 + $0x728] sm:$0xff]
    %v284 = vld [vmem:[#allocation5 + $0x730] sm:$0xff]
    %v285 = vld [vmem:[#allocation5 + $0x738] sm:$0xff]
    %v286 = vld [vmem:[#allocation5 + $0x740] sm:$0xff]
    %v287 = vld [vmem:[#allocation5 + $0x748] sm:$0xff]
    %v288 = vld [vmem:[#allocation5 + $0x750] sm:$0xff]
    %v289 = vld [vmem:[#allocation5 + $0x758] sm:$0xff]
    %v290 = vld [vmem:[#allocation5 + $0x760] sm:$0xff]
    %v291 = vld [vmem:[#allocation5 + $0x768] sm:$0xff]
    %v292 = vld [vmem:[#allocation5 + $0x770] sm:$0xff]
    %v293 = vld [vmem:[#allocation5 + $0x778] sm:$0xff]
    %v294 = vld [vmem:[#allocation5 + $0x780] sm:$0xff]
    %v295 = vld [vmem:[#allocation5 + $0x788] sm:$0xff]
    %v296 = vld [vmem:[#allocation5 + $0x790] sm:$0xff]
    %v297 = vld [vmem:[#allocation5 + $0x798] sm:$0xff]
    %v298 = vld [vmem:[#allocation5 + $0x7a0] sm:$0xff]
    %v299 = vld [vmem:[#allocation5 + $0x7a8] sm:$0xff]
    %v300 = vld [vmem:[#allocation5 + $0x7b0] sm:$0xff]
    %v301 = vld [vmem:[#allocation5 + $0x7b8] sm:$0xff]
    %v302 = vld [vmem:[#allocation5 + $0x7c0] sm:$0xff]
    %v303 = vld [vmem:[#allocation5 + $0x7c8] sm:$0xff]
    %v304 = vld [vmem:[#allocation5 + $0x7d0] sm:$0xff]
    %v305 = vld [vmem:[#allocation5 + $0x7d8] sm:$0xff]
    %v306 = vld [vmem:[#allocation5 + $0x7e0] sm:$0xff]
    %v307 = vld [vmem:[#allocation5 + $0x7e8] sm:$0xff]
    %v308 = vld [vmem:[#allocation5 + $0x7f0] sm:$0xff]
    %v309 = vld [vmem:[#allocation5 + $0x7f8] sm:$0xff]
    %310 = vmatprep.subr.mxu0 %v115
    %311 = vmatpush1.msra.mxu0 %v114
    %312 = vmatprep.subr.mxu0 %v111
    %313 = vmatpush1.msra.mxu0 %v110
    %314 = vmatprep.subr.mxu0 %v107
    %315 = vmatpush1.msra.mxu0 %v106
    %316 = vmatprep.subr.mxu0 %v103
    %317 = vmatpush1.msra.mxu0 %v102
    %318 = vmatprep.subr.mxu0 %v99
    %319 = vmatpush1.msra.mxu0 %v98
    %320 = vmatprep.subr.mxu0 %v95
    %321 = vmatpush1.msra.mxu0 %v94
    %322 = vmatprep.subr.mxu0 %v91
    %323 = vmatpush1.msra.mxu0 %v90
    %324 = vmatprep.subr.mxu0 %v87
    %325 = vmatpush1.msra.mxu0 %v86
    %326 = vmatprep.subr.mxu0 %v83
    %327 = vmatpush1.msra.mxu0 %v82
    %328 = vmatprep.subr.mxu0 %v79
    %329 = vmatpush1.msra.mxu0 %v78
    %330 = vmatprep.subr.mxu0 %v75
    %331 = vmatpush1.msra.mxu0 %v74
    %332 = vmatprep.subr.mxu0 %v71
    %333 = vmatpush1.msra.mxu0 %v70
    %334 = vmatprep.subr.mxu0 %v67
    %335 = vmatpush1.msra.mxu0 %v66
    %336 = vmatprep.subr.mxu0 %v63
    %337 = vmatpush1.msra.mxu0 %v62
    %338 = vmatprep.subr.mxu0 %v59
    %339 = vmatpush1.msra.mxu0 %v58
    %340 = vmatprep.subr.mxu0 %v55
    %341 = vmatpush1.msra.mxu0 %v54
    %342 = vmatprep.subr.mxu0 %v179
    %343 = vmatpush2.msra.mxu0 %v178
    %344 = vmatprep.subr.mxu0 %v175
    %345 = vmatpush2.msra.mxu0 %v174
    %346 = vmatprep.subr.mxu0 %v171
    %347 = vmatpush2.msra.mxu0 %v170
    %348 = vmatprep.subr.mxu0 %v167
    %349 = vmatpush2.msra.mxu0 %v166
    %350 = vmatprep.subr.mxu0 %v163
    %351 = vmatpush2.msra.mxu0 %v162
    %352 = vmatprep.subr.mxu0 %v159
    %353 = vmatpush2.msra.mxu0 %v158
    %354 = vmatprep.subr.mxu0 %v155
    %355 = vmatpush2.msra.mxu0 %v154
    %356 = vmatprep.subr.mxu0 %v151
    %357 = vmatpush2.msra.mxu0 %v150
    %358 = vmatprep.subr.mxu0 %v147
    %359 = vmatpush2.msra.mxu0 %v146
    %360 = vmatprep.subr.mxu0 %v143
    %361 = vmatpush2.msra.mxu0 %v142
    %362 = vmatprep.subr.mxu0 %v139
    %363 = vmatpush2.msra.mxu0 %v138
    %364 = vmatprep.subr.mxu0 %v135
    %365 = vmatpush2.msra.mxu0 %v134
    %366 = vmatprep.subr.mxu0 %v131
    %367 = vmatpush2.msra.mxu0 %v130
    %368 = vmatprep.subr.mxu0 %v127
    %369 = vmatpush2.msra.mxu0 %v126
    %370 = vmatprep.subr.mxu0 %v123
    %371 = vmatpush2.msra.mxu0 %v122
    %372 = vmatprep.subr.mxu0 %v119
    %373 = vmatpush2.msra.mxu0 %v118
    %374 = vmatprep.mubr.f32.mxu0 %v51
    %375 = vmatmul.mubr.f32.gmra.mxu0 %v50
    %v376 = vpop.f32.mrf.mxu0
    %v377 = vadd.f32 0.0, %v376
    %v378 = vpop.f32.mrf.mxu0
    %v379 = vadd.f32 0.0, %v378
    %380 = vdwg.mxu0
    %381 = vmatprep.subr.mxu0 %v243
    %382 = vmatpush1.msra.mxu0 %v242
    %383 = vmatprep.subr.mxu0 %v239
    %384 = vmatpush1.msra.mxu0 %v238
    %385 = vmatprep.subr.mxu0 %v235
    %386 = vmatpush1.msra.mxu0 %v234
    %387 = vmatprep.subr.mxu0 %v231
    %388 = vmatpush1.msra.mxu0 %v230
    %389 = vmatprep.subr.mxu0 %v227
    %390 = vmatpush1.msra.mxu0 %v226
    %391 = vmatprep.subr.mxu0 %v223
    %392 = vmatpush1.msra.mxu0 %v222
    %393 = vmatprep.subr.mxu0 %v219
    %394 = vmatpush1.msra.mxu0 %v218
    %395 = vmatprep.subr.mxu0 %v215
    %396 = vmatpush1.msra.mxu0 %v214
    %397 = vmatprep.subr.mxu0 %v211
    %398 = vmatpush1.msra.mxu0 %v210
    %399 = vmatprep.subr.mxu0 %v207
    %400 = vmatpush1.msra.mxu0 %v206
    %401 = vmatprep.subr.mxu0 %v203
    %402 = vmatpush1.msra.mxu0 %v202
    %403 = vmatprep.subr.mxu0 %v199
    %404 = vmatpush1.msra.mxu0 %v198
    %405 = vmatprep.subr.mxu0 %v195
    %406 = vmatpush1.msra.mxu0 %v194
    %407 = vmatprep.subr.mxu0 %v191
    %408 = vmatpush1.msra.mxu0 %v190
    %409 = vmatprep.subr.mxu0 %v187
    %410 = vmatpush1.msra.mxu0 %v186
    %411 = vmatprep.subr.mxu0 %v183
    %412 = vmatpush1.msra.mxu0 %v182
    %413 = vmatprep.subr.mxu0 %v307
    %414 = vmatpush2.msra.mxu0 %v306
    %415 = vmatprep.subr.mxu0 %v303
    %416 = vmatpush2.msra.mxu0 %v302
    %417 = vmatprep.subr.mxu0 %v299
    %418 = vmatpush2.msra.mxu0 %v298
    %419 = vmatprep.subr.mxu0 %v295
    %420 = vmatpush2.msra.mxu0 %v294
    %421 = vmatprep.subr.mxu0 %v291
    %422 = vmatpush2.msra.mxu0 %v290
    %423 = vmatprep.subr.mxu0 %v287
    %424 = vmatpush2.msra.mxu0 %v286
    %425 = vmatprep.subr.mxu0 %v283
    %426 = vmatpush2.msra.mxu0 %v282
    %427 = vmatprep.subr.mxu0 %v279
    %428 = vmatpush2.msra.mxu0 %v278
    %429 = vmatprep.subr.mxu0 %v275
    %430 = vmatpush2.msra.mxu0 %v274
    %431 = vmatprep.subr.mxu0 %v271
    %432 = vmatpush2.msra.mxu0 %v270
    %433 = vmatprep.subr.mxu0 %v267
    %434 = vmatpush2.msra.mxu0 %v266
    %435 = vmatprep.subr.mxu0 %v263
    %436 = vmatpush2.msra.mxu0 %v262
    %437 = vmatprep.subr.mxu0 %v259
    %438 = vmatpush2.msra.mxu0 %v258
    %439 = vmatprep.subr.mxu0 %v255
    %440 = vmatpush2.msra.mxu0 %v254
    %441 = vmatprep.subr.mxu0 %v251
    %442 = vmatpush2.msra.mxu0 %v250
    %443 = vmatprep.subr.mxu0 %v247
    %444 = vmatpush2.msra.mxu0 %v246
    %445 = vmatprep.mubr.f32.mxu0 %v53
    %446 = vmatmul.mubr.f32.gmra.mxu0 %v52
    %v447 = vpop.f32.mrf.mxu0
    %v448 = vadd.f32 %v377, %v447
    %v449 = vpop.f32.mrf.mxu0
    %v450 = vadd.f32 %v379, %v449
    %451 = vdwg.mxu0
    %452 = vmatprep.subr.mxu0 %v117
    %453 = vmatpush1.msra.mxu0 %v116
    %454 = vmatprep.subr.mxu0 %v113
    %455 = vmatpush1.msra.mxu0 %v112
    %456 = vmatprep.subr.mxu0 %v109
    %457 = vmatpush1.msra.mxu0 %v108
    %458 = vmatprep.subr.mxu0 %v105
    %459 = vmatpush1.msra.mxu0 %v104
    %460 = vmatprep.subr.mxu0 %v101
    %461 = vmatpush1.msra.mxu0 %v100
    %462 = vmatprep.subr.mxu0 %v97
    %463 = vmatpush1.msra.mxu0 %v96
    %464 = vmatprep.subr.mxu0 %v93
    %465 = vmatpush1.msra.mxu0 %v92
    %466 = vmatprep.subr.mxu0 %v89
    %467 = vmatpush1.msra.mxu0 %v88
    %468 = vmatprep.subr.mxu0 %v85
    %469 = vmatpush1.msra.mxu0 %v84
    %470 = vmatprep.subr.mxu0 %v81
    %471 = vmatpush1.msra.mxu0 %v80
    %472 = vmatprep.subr.mxu0 %v77
    %473 = vmatpush1.msra.mxu0 %v76
    %474 = vmatprep.subr.mxu0 %v73
    %475 = vmatpush1.msra.mxu0 %v72
    %476 = vmatprep.subr.mxu0 %v69
    %477 = vmatpush1.msra.mxu0 %v68
    %478 = vmatprep.subr.mxu0 %v65
    %479 = vmatpush1.msra.mxu0 %v64
    %480 = vmatprep.subr.mxu0 %v61
    %481 = vmatpush1.msra.mxu0 %v60
    %482 = vmatprep.subr.mxu0 %v57
    %483 = vmatpush1.msra.mxu0 %v56
    %484 = vmatprep.subr.mxu0 %v181
    %485 = vmatpush2.msra.mxu0 %v180
    %486 = vmatprep.subr.mxu0 %v177
    %487 = vmatpush2.msra.mxu0 %v176
    %488 = vmatprep.subr.mxu0 %v173
    %489 = vmatpush2.msra.mxu0 %v172
    %490 = vmatprep.subr.mxu0 %v169
    %491 = vmatpush2.msra.mxu0 %v168
    %492 = vmatprep.subr.mxu0 %v165
    %493 = vmatpush2.msra.mxu0 %v164
    %494 = vmatprep.subr.mxu0 %v161
    %495 = vmatpush2.msra.mxu0 %v160
    %496 = vmatprep.subr.mxu0 %v157
    %497 = vmatpush2.msra.mxu0 %v156
    %498 = vmatprep.subr.mxu0 %v153
    %499 = vmatpush2.msra.mxu0 %v152
    %500 = vmatprep.subr.mxu0 %v149
    %501 = vmatpush2.msra.mxu0 %v148
    %502 = vmatprep.subr.mxu0 %v145
    %503 = vmatpush2.msra.mxu0 %v144
    %504 = vmatprep.subr.mxu0 %v141
    %505 = vmatpush2.msra.mxu0 %v140
    %506 = vmatprep.subr.mxu0 %v137
    %507 = vmatpush2.msra.mxu0 %v136
    %508 = vmatprep.subr.mxu0 %v133
    %509 = vmatpush2.msra.mxu0 %v132
    %510 = vmatprep.subr.mxu0 %v129
    %511 = vmatpush2.msra.mxu0 %v128
    %512 = vmatprep.subr.mxu0 %v125
    %513 = vmatpush2.msra.mxu0 %v124
    %514 = vmatprep.subr.mxu0 %v121
    %515 = vmatpush2.msra.mxu0 %v120
    %516 = vmatprep.mubr.f32.mxu0 %v51
    %517 = vmatmul.mubr.f32.gmra.mxu0 %v50
    %v518 = vpop.f32.mrf.mxu0
    %v519 = vadd.f32 0.0, %v518
    %v520 = vpop.f32.mrf.mxu0
    %v521 = vadd.f32 0.0, %v520
    %522 = vdwg.mxu0
    %523 = vmatprep.subr.mxu0 %v245
    %524 = vmatpush1.msra.mxu0 %v244
    %525 = vmatprep.subr.mxu0 %v241
    %526 = vmatpush1.msra.mxu0 %v240
    %527 = vmatprep.subr.mxu0 %v237
    %528 = vmatpush1.msra.mxu0 %v236
    %529 = vmatprep.subr.mxu0 %v233
    %530 = vmatpush1.msra.mxu0 %v232
    %531 = vmatprep.subr.mxu0 %v229
    %532 = vmatpush1.msra.mxu0 %v228
    %533 = vmatprep.subr.mxu0 %v225
    %534 = vmatpush1.msra.mxu0 %v224
    %535 = vmatprep.subr.mxu0 %v221
    %536 = vmatpush1.msra.mxu0 %v220
    %537 = vmatprep.subr.mxu0 %v217
    %538 = vmatpush1.msra.mxu0 %v216
    %539 = vmatprep.subr.mxu0 %v213
    %540 = vmatpush1.msra.mxu0 %v212
    %541 = vmatprep.subr.mxu0 %v209
    %542 = vmatpush1.msra.mxu0 %v208
    %543 = vmatprep.subr.mxu0 %v205
    %544 = vmatpush1.msra.mxu0 %v204
    %545 = vmatprep.subr.mxu0 %v201
    %546 = vmatpush1.msra.mxu0 %v200
    %547 = vmatprep.subr.mxu0 %v197
    %548 = vmatpush1.msra.mxu0 %v196
    %549 = vmatprep.subr.mxu0 %v193
    %550 = vmatpush1.msra.mxu0 %v192
    %551 = vmatprep.subr.mxu0 %v189
    %552 = vmatpush1.msra.mxu0 %v188
    %553 = vmatprep.subr.mxu0 %v185
    %554 = vmatpush1.msra.mxu0 %v184
    %555 = vmatprep.subr.mxu0 %v309
    %556 = vmatpush2.msra.mxu0 %v308
    %557 = vmatprep.subr.mxu0 %v305
    %558 = vmatpush2.msra.mxu0 %v304
    %559 = vmatprep.subr.mxu0 %v301
    %560 = vmatpush2.msra.mxu0 %v300
    %561 = vmatprep.subr.mxu0 %v297
    %562 = vmatpush2.msra.mxu0 %v296
    %563 = vmatprep.subr.mxu0 %v293
    %564 = vmatpush2.msra.mxu0 %v292
    %565 = vmatprep.subr.mxu0 %v289
    %566 = vmatpush2.msra.mxu0 %v288
    %567 = vmatprep.subr.mxu0 %v285
    %568 = vmatpush2.msra.mxu0 %v284
    %569 = vmatprep.subr.mxu0 %v281
    %570 = vmatpush2.msra.mxu0 %v280
    %571 = vmatprep.subr.mxu0 %v277
    %572 = vmatpush2.msra.mxu0 %v276
    %573 = vmatprep.subr.mxu0 %v273
    %574 = vmatpush2.msra.mxu0 %v272
    %575 = vmatprep.subr.mxu0 %v269
    %576 = vmatpush2.msra.mxu0 %v268
    %577 = vmatprep.subr.mxu0 %v265
    %578 = vmatpush2.msra.mxu0 %v264
    %579 = vmatprep.subr.mxu0 %v261
    %580 = vmatpush2.msra.mxu0 %v260
    %581 = vmatprep.subr.mxu0 %v257
    %582 = vmatpush2.msra.mxu0 %v256
    %583 = vmatprep.subr.mxu0 %v253
    %584 = vmatpush2.msra.mxu0 %v252
    %585 = vmatprep.subr.mxu0 %v249
    %586 = vmatpush2.msra.mxu0 %v248
    %587 = vmatprep.mubr.f32.mxu0 %v53
    %588 = vmatmul.mubr.f32.gmra.mxu0 %v52
    %v589 = vpop.f32.mrf.mxu0
    %v590 = vadd.f32 %v519, %v589
    %v591 = vpop.f32.mrf.mxu0
    %v592 = vadd.f32 %v521, %v591
    %593 = vdwg.mxu0
    %v594 = vadd.f32 %v46, %v448
    %v595 = vadd.f32 %v47, %v450
    %v596 = vadd.f32 %v48, %v590
    %v597 = vadd.f32 %v49, %v592
    %598 = vst [vmem:[#allocation7] sm:$0xff] %v594
    %599 = vst [vmem:[#allocation7 + $0x8] sm:$0xff] %v595
    %600 = vst [vmem:[#allocation7 + $0x10] sm:$0xff] %v596
    %601 = vst [vmem:[#allocation7 + $0x18] sm:$0xff] %v597
    // Predicated region
    $region22: #{tpu_custom_call.1} parent=1 // pred_check
      _
    $region23: #{tpu_custom_call.1} parent=1 // pred_check_branch
      %603 = sbr.rel (0) target = $region25
    $region24: #{tpu_custom_call.1} parent=1 // pred_region
      %s605 = ssub.s32 512, 512
      %606 = vsyncadd [#allocation4], %s605
      %s608 = sshll.u32 [#allocation7], 4
      %s609 = int_to_ptr.vmem [resolvable:$true] %s608
      %611 = dma.vmem_to_hbm [thread:$0]  %s609, 512, %s2, [#allocation4]
    $region25: #{tpu_custom_call.1} parent=1 // pred_fallthru
      _
    // Predicated region
    $region26: #{tpu_custom_call.1} parent=1 // pred_check
      _
    $region27: #{tpu_custom_call.1} parent=1 // pred_check_branch
      %613 = sbr.rel (0) target = $region29
    $region28: #{tpu_custom_call.1} parent=1 // pred_region
      %614 = dma.done [#allocation4], 512
    $region29: #{tpu_custom_call.1} parent=1 // pred_fallthru
      _
    %615 = vsyncpa [#allocation3], 1
    %616 = vsyncpa [#allocation6], 1
    %617 = vsyncpa [#allocation4], 1

</llo_original>
